<compile_context>
chip_gen: v6e
topology: v6e:2x2x1
jax: 0.10.0
libtpu: 0.0.40
codegen_flags: <defaults>
</compile_context>

<pallas_src>
import functools

import jax
import jax.numpy as jnp
from jax.experimental import pallas as pl
from jax.experimental.pallas import tpu as pltpu


def get_bond_feature_dims():
    # Matches ogb.utils.features.get_bond_feature_dims()
    return [5, 6, 2]


def _round_up(x, m):
    return (x + m - 1) // m * m


_VMEM_BUDGET_BYTES = 16 * 1024 * 1024   # accounted working set per grid step
_VMEM_LIMIT_BYTES = 32 * 1024 * 1024    # scoped limit handed to Mosaic (2x headroom)


# --------------------------------------------------------------------------
# Kernel: one boolean multi-hot + one MXU matmul per tile.
# --------------------------------------------------------------------------
def _bond_encoder_kernel(idx_ref, tab_ref, out_ref):
    # idx_ref : (TEg, g)          int32  combined indices, pre-offset by slot*vc_pad
    # tab_ref : (g*vc_pad, g*Dp)  compute dtype, block-diagonal combined table
    # out_ref : (TEg, g*Dp)       out dtype
    teg, g = idx_ref.shape
    k = tab_ref.shape[0]

    lanes = jax.lax.broadcasted_iota(jnp.int32, (teg, k), 1)
    idx = idx_ref[...]

    # Slots own disjoint lane windows -> boolean OR of the per-slot compares
    # gives the multi-hot mask; ONE final cast feeds the MXU operand.
    hit = lanes == idx[:, 0:1]
    for j in range(1, g):                        # g is a small static int (<= 4)
        hit = jnp.logical_or(hit, lanes == idx[:, j:j + 1])
    onehot = hit.astype(tab_ref.dtype)

    out_ref[...] = jnp.dot(
        onehot, tab_ref[...], preferred_element_type=jnp.float32
    ).astype(out_ref.dtype)


# --------------------------------------------------------------------------
# One-time table preparation (cache the result across forward calls).
# --------------------------------------------------------------------------
def prepare_bond_encoder(tables, *, compute_dtype=jnp.float32):
    """Combine per-feature tables into one block-diagonal lane-dense table."""
    tables = [jnp.asarray(t) for t in tables]
    dims = tuple(int(t.shape[0]) for t in tables)
    d = int(tables[0].shape[1])

    # Sum-of-embeddings over the cartesian product of feature values
    # (same addition order as the PyTorch forward -> exact in f32).
    comb = tables[0]
    for t in tables[1:]:
        comb = (comb[:, None, :] + t[None, :, :]).reshape(-1, d)
    vc = comb.shape[0]
    vc_pad = _round_up(max(vc, 16), 16)

    # Lane-dense output: fold g edges per row when D | 128, else pad D up to a
    # multiple of 128 so stores are unmasked full vector stores.
    if d < 128 and 128 % d == 0:
        g, d_eff = 128 // d, d
    else:
        g, d_eff = 1, _round_up(d, 128)

    comb = jnp.pad(comb, ((0, vc_pad - vc), (0, d_eff - d)))
    big = comb if g == 1 else jnp.kron(jnp.eye(g, dtype=comb.dtype), comb)
    big = big.astype(compute_dtype)

    return {"table": big, "dims": dims, "vc_pad": vc_pad,
            "g": g, "d": d, "d_eff": d_eff}


# --------------------------------------------------------------------------
# Tile sizing with an explicit all-buffer VMEM budget.
# --------------------------------------------------------------------------
def _choose_tile_rows(eg, g, vc_pad, n_out, tab_bytes, out_bytes, tile_e,
                      min_grid_steps):
    k = g * vc_pad
    # Per-row live VMEM: 2x index block (lane-padded to 128 lanes int32),
    # 2x output block, the one-hot MXU operand and one int32 iota/mask temp.
    per_row = (2 * 128 * 4) + (2 * n_out * out_bytes) + k * tab_bytes + k * 4
    fixed = 2 * k * n_out * tab_bytes            # combined table (worst case 2 bufs)
    teg = max(8, (_VMEM_BUDGET_BYTES - fixed) // per_row)
    teg = min(teg, max(8, tile_e // g))
    # Keep >= min_grid_steps steps so the "parallel" axis can shard across
    # v7x's two TensorCores.
    teg = min(teg, _round_up(-(-eg // min_grid_steps), 8))
    teg = max(8, (teg // 8) * 8)
    return int(teg)


# --------------------------------------------------------------------------
# Forward.
# --------------------------------------------------------------------------
@functools.partial(jax.jit, static_argnames=(
    "dims", "vc_pad", "g", "d", "d_eff", "tile_e", "out_dtype",
    "min_grid_steps"))
def _bond_encoder_apply(edge_attr, table, *, dims, vc_pad, g, d, d_eff,
                        tile_e, out_dtype, min_grid_steps):
    e, f = edge_attr.shape
    assert f == len(dims)

    # Row-major combined index: idx0*d1*d2 + idx1*d2 + ...  (fused by XLA with
    # the pad/reshape/offset below into a single cheap elementwise pass).
    strides = []
    s = 1
    for dmn in reversed(dims):
        strides.append(s)
        s *= dmn
    strides = strides[::-1]
    cidx = jnp.zeros((e,), jnp.int32)
    for i, st in enumerate(strides):
        cidx = cidx + edge_attr[:, i].astype(jnp.int32) * st

    n_out = g * d_eff
    eg = -(-e // g)
    teg = _choose_tile_rows(eg, g, vc_pad, n_out,
                            jnp.dtype(table.dtype).itemsize,
                            jnp.dtype(out_dtype).itemsize,
                            tile_e, min_grid_steps)
    eg_pad = _round_up(max(eg, 1), teg)
    e_pad = eg_pad * g

    cidx = jnp.pad(cidx, (0, e_pad - e)).reshape(eg_pad, g)
    if g > 1:
        cidx = cidx + (jnp.arange(g, dtype=jnp.int32) * vc_pad)[None, :]

    out = pl.pallas_call(
        _bond_encoder_kernel,
        out_shape=jax.ShapeDtypeStruct((eg_pad, n_out), out_dtype),
        grid_spec=pltpu.PrefetchScalarGridSpec(
            num_scalar_prefetch=0,
            grid=(eg_pad // teg,),
            in_specs=[
                pl.BlockSpec((teg, g), lambda i: (i, 0)),
                pl.BlockSpec((g * vc_pad, n_out), lambda i: (0, 0)),
            ],
            out_specs=pl.BlockSpec((teg, n_out), lambda i: (i, 0)),
        ),
        compiler_params=pltpu.CompilerParams(
            dimension_semantics=("parallel",),
            vmem_limit_bytes=_VMEM_LIMIT_BYTES),
    )(cidx, table)

    # (Eg_pad, g*Dp) -> (E_pad, Dp) -> drop padded edges / padded lanes.
    return out.reshape(eg_pad * g, d_eff)[:e, :d]


def bond_encoder_forward(edge_attr, prepared, *, out_dtype=None, tile_e=32768,
                         min_grid_steps=4):
    """edge_attr: [E, F] int -> [E, D].  `prepared` from prepare_bond_encoder."""
    table = prepared["table"]
    if out_dtype is None:
        out_dtype = table.dtype          # bf16 table -> bf16 activations
    return _bond_encoder_apply(
        edge_attr, table,
        dims=prepared["dims"], vc_pad=prepared["vc_pad"], g=prepared["g"],
        d=prepared["d"], d_eff=prepared["d_eff"],
        tile_e=int(tile_e), out_dtype=jnp.dtype(out_dtype),
        min_grid_steps=int(min_grid_steps))


# --------------------------------------------------------------------------
# Params / reference.
# --------------------------------------------------------------------------
def init_bond_encoder_params(key, emb_dim):
    """Per-feature embedding tables with deterministic xavier_uniform init."""
    dims = get_bond_feature_dims()
    tables = []
    for i, dim in enumerate(dims):
        k = jax.random.fold_in(key, i)
        bound = (6.0 / (dim + emb_dim)) ** 0.5
        tables.append(jax.random.uniform(k, (dim, emb_dim), jnp.float32,
                                         minval=-bound, maxval=bound))
    return tables, dims


def bond_encoder_ref(edge_attr, tables):
    """Plain-JAX reference identical to the PyTorch forward."""
    out = 0
    for i in range(edge_attr.shape[1]):
        out = out + tables[i][edge_attr[:, i]]
    return out


if __name__ == "__main__":
    key = jax.random.PRNGKey(0)
    emb_dim = 32
    num_edges = 16

    tables, dims = init_bond_encoder_params(key, emb_dim)

    # Deterministic integer bond features, each column < its vocab size.
    cols = [jax.random.randint(jax.random.fold_in(key, 100 + i),
                               (num_edges,), 0, dim, jnp.int32)
            for i, dim in enumerate(dims)]
    edge_attr = jnp.stack(cols, axis=1)          # [E, F] int32

    ref = bond_encoder_ref(edge_attr, tables)

    # f32 path: exact parity with the PyTorch/JAX reference.
    prep_f32 = prepare_bond_encoder(tables, compute_dtype=jnp.float32)
    out_f32 = jax.block_until_ready(bond_encoder_forward(edge_attr, prep_f32))
    assert out_f32.shape == (num_edges, emb_dim)
    assert jnp.allclose(out_f32, ref, atol=1e-5, rtol=1e-5)

    # bf16 fast path (native bf16 MXU, half the VMEM + writeback traffic).
    prep_bf16 = prepare_bond_encoder(tables, compute_dtype=jnp.bfloat16)
    out_bf16 = jax.block_until_ready(
        bond_encoder_forward(edge_attr, prep_bf16, out_dtype=jnp.bfloat16))
    assert out_bf16.shape == (num_edges, emb_dim)
    assert jnp.allclose(out_bf16.astype(jnp.float32), ref, atol=3e-2, rtol=3e-2)

    print("KERNEL_OK")
</pallas_src>

<mosaic_0001>
module attributes {stable_mosaic.version = 11 : i64} {
  func.func @_bond_encoder_kernel(%arg0: i32, %arg1: memref<8x4xi32, #tpu.memory_space<vmem>>, %arg2: memref<256x128xf32, #tpu.memory_space<vmem>>, %arg3: memref<8x128xf32, #tpu.memory_space<vmem>>) attributes {dimension_semantics = [#tpu.dimension_semantics<parallel>], iteration_bounds = array<i64: 1>, scalar_prefetch = 0 : i64, scratch_operands = 0 : i64, tpu.core_type = #tpu.core_type<tc>, window_params = [{transform_indices = @transform_0, window_bounds = array<i64: 8, 4>}, {pipeline_mode = #tpu.pipeline_mode<synchronous>, transform_indices = @transform_1, window_bounds = array<i64: 256, 128>}, {transform_indices = @transform_2, window_bounds = array<i64: 8, 128>}]} {
    %0 = tpu.iota {dimensions = array<i32: 1>} : vector<8x256xi32>
    %c0 = arith.constant 0 : index
    %c0_0 = arith.constant 0 : index
    %1 = vector.load %arg1[%c0, %c0_0] : memref<8x4xi32, #tpu.memory_space<vmem>>, vector<8x4xi32>
    %2 = vector.extract_strided_slice %1 {offsets = [0, 0], sizes = [8, 1], strides = [1, 1]} : vector<8x4xi32> to vector<8x1xi32>
    %3 = vector.broadcast %2 : vector<8x1xi32> to vector<8x256xi32>
    %4 = arith.cmpi eq, %0, %3 : vector<8x256xi32>
    %5 = vector.extract_strided_slice %1 {offsets = [0, 1], sizes = [8, 1], strides = [1, 1]} : vector<8x4xi32> to vector<8x1xi32>
    %6 = vector.broadcast %5 : vector<8x1xi32> to vector<8x256xi32>
    %7 = arith.cmpi eq, %0, %6 : vector<8x256xi32>
    %8 = arith.ori %4, %7 : vector<8x256xi1>
    %9 = vector.extract_strided_slice %1 {offsets = [0, 2], sizes = [8, 1], strides = [1, 1]} : vector<8x4xi32> to vector<8x1xi32>
    %10 = vector.broadcast %9 : vector<8x1xi32> to vector<8x256xi32>
    %11 = arith.cmpi eq, %0, %10 : vector<8x256xi32>
    %12 = arith.ori %8, %11 : vector<8x256xi1>
    %13 = vector.extract_strided_slice %1 {offsets = [0, 3], sizes = [8, 1], strides = [1, 1]} : vector<8x4xi32> to vector<8x1xi32>
    %14 = vector.broadcast %13 : vector<8x1xi32> to vector<8x256xi32>
    %15 = arith.cmpi eq, %0, %14 : vector<8x256xi32>
    %16 = arith.ori %12, %15 : vector<8x256xi1>
    %17 = arith.extui %16 : vector<8x256xi1> to vector<8x256xi32>
    %18 = arith.sitofp %17 : vector<8x256xi32> to vector<8x256xf32>
    %c0_1 = arith.constant 0 : index
    %c0_2 = arith.constant 0 : index
    %19 = vector.load %arg2[%c0_1, %c0_2] : memref<256x128xf32, #tpu.memory_space<vmem>>, vector<256x128xf32>
    %cst = arith.constant dense<0.000000e+00> : vector<8x128xf32>
    %20 = tpu.matmul %18, %19, %cst {dimension_numbers = #tpu.dot_dimension_numbers<[1], [0], [0], [1], [0, 0, 1, 1], [], []>} : vector<8x256xf32>, vector<256x128xf32>, vector<8x128xf32> -> vector<8x128xf32>
    %c0_3 = arith.constant 0 : index
    %c0_4 = arith.constant 0 : index
    %21 = vector.load %arg3[%c0_3, %c0_4] : memref<8x128xf32, #tpu.memory_space<vmem>>, vector<8x128xf32>
    tpu.vector_store %arg3[%c0_3, %c0_4], %20 {strides = array<i32>} : memref<8x128xf32, #tpu.memory_space<vmem>>, vector<8x128xf32>,
    return
  }
  func.func @transform_0(%arg0: i32) -> (i32, i32) {
    %c0_i32 = arith.constant 0 : i32
    %c0_i32_0 = arith.constant 0 : i32
    return %arg0, %c0_i32 : i32, i32
  }
  func.func @transform_1(%arg0: i32) -> (i32, i32) {
    %c0_i32 = arith.constant 0 : i32
    %c0_i32_0 = arith.constant 0 : i32
    %c0_i32_1 = arith.constant 0 : i32
    return %c0_i32, %c0_i32_0 : i32, i32
  }
  func.func @transform_2(%arg0: i32) -> (i32, i32) {
    %c0_i32 = arith.constant 0 : i32
    %c0_i32_0 = arith.constant 0 : i32
    return %arg0, %c0_i32 : i32, i32
  }
}

</mosaic_0001>

<llo_original>
// kernel: _bond_encoder_apply.1
$region0: #{_bond_encoder_apply.1}
  #allocation0 [shape = 'u32[]', space=smem, size = 0x4, offset = 0x4, fixed_abs, tag = 'smem constant byte address 0x4 - core index']
  #allocation1 [shape = 'u32[144,128]{1,0:T(1,128)}', space=vmem, size = 0x12000, scoped, tag = 'internal scratch']
  %s0 = inlined_call_operand.vmem [shape: s32[8,4], index: 0, kind: input, shape index: {}]
  %s1 = inlined_call_operand.hbm [shape: f32[256,128], index: 1, kind: input, shape index: {}]
  %s2 = inlined_call_operand.vmem [shape: f32[8,128], index: 2, kind: output, shape index: {}]
  %s3 = sld [smem:[#allocation0]]
  $region22: #{_bond_encoder_apply.1} parent=0
    _
  %s5 = ssub.s32 1, %s3
  %s6 = scalar_select 0, %s5, %s3
  $region1: #{_bond_encoder_apply.1} parent=0
    #allocation2 [shape = 'u8[131072]{0}', space=vmem, size = 0x20000, scoped, tag = 'input window, operand 1, single buffered']
    #allocation3 [shape = 's32[1]{0}', space=sflag, size = 0x4, scoped, tag = 'scoped memory for _bond_encoder_apply.1']
    %7 = vsyncpa [#allocation3], 0
    // Predicated region
    $region2: #{_bond_encoder_apply.1} parent=1 // pred_check
      _
    $region3: #{_bond_encoder_apply.1} parent=1 // pred_check_branch
      %9 = sbr.rel (0) target = $region5
    $region4: #{_bond_encoder_apply.1} parent=1 // pred_region
      _
    $region5: #{_bond_encoder_apply.1} parent=1 // pred_fallthru
      _
    // Predicated region
    $region6: #{_bond_encoder_apply.1} parent=1 // pred_check
      _
    $region7: #{_bond_encoder_apply.1} parent=1 // pred_check_branch
      %11 = sbr.rel (0) target = $region9
    $region8: #{_bond_encoder_apply.1} parent=1 // pred_region
      %s13 = ssub.s32 4096, 4096
      %14 = vsyncadd [#allocation3], %s13
      %s15 = sshll.u32 [#allocation2], 4
      %s16 = int_to_ptr.vmem [resolvable:$true] %s15
      %21 = dma.hbm_to_vmem [thread:$0]  %s1, 4096, %s16, [#allocation3], 128, 128, 8
    $region9: #{_bond_encoder_apply.1} parent=1 // pred_fallthru
      _
    // Predicated region
    $region10: #{_bond_encoder_apply.1} parent=1 // pred_check
      _
    $region11: #{_bond_encoder_apply.1} parent=1 // pred_check_branch
      %23 = sbr.rel (0) target = $region13
    $region12: #{_bond_encoder_apply.1} parent=1 // pred_region
      %24 = dma.done [#allocation3], 4096
    $region13: #{_bond_encoder_apply.1} parent=1 // pred_fallthru
      _
    %v25 = vlaneseq
    %v26 = vand.u32 %v25, 127
    %v27 = vadd.s32 %v26, 128
    %v28 = vld [vmem:[%s0] sm:$0xff]
    %29 = vset.pattern.permute.xlu0 0
    %30 = vperm.xlu0 %29, %v28
    %v31 = vpop.permute.xlu0 %30
    %vm32 = vcmp.eq.s32.totalorder %v26, %v31
    %vm33 = vcmp.eq.s32.totalorder %v27, %v31
    %34 = vset.pattern.permute.xlu0 1
    %35 = vperm.xlu0 %34, %v28
    %v36 = vpop.permute.xlu0 %35
    %vm37 = vcmp.eq.s32.totalorder %v26, %v36
    %vm38 = vcmp.eq.s32.totalorder %v27, %v36
    %vm39 = vmor %vm32, %vm37
    %vm40 = vmor %vm33, %vm38
    %41 = vset.pattern.permute.xlu0 2
    %42 = vperm.xlu0 %41, %v28
    %v43 = vpop.permute.xlu0 %42
    %vm44 = vcmp.eq.s32.totalorder %v26, %v43
    %vm45 = vcmp.eq.s32.totalorder %v27, %v43
    %vm46 = vmor %vm39, %vm44
    %vm47 = vmor %vm40, %vm45
    %48 = vset.pattern.permute.xlu0 3
    %49 = vperm.xlu0 %48, %v28
    %v50 = vpop.permute.xlu0 %49
    %vm51 = vcmp.eq.s32.totalorder %v26, %v50
    %vm52 = vcmp.eq.s32.totalorder %v27, %v50
    %vm53 = vmor %vm46, %vm51
    %vm54 = vmor %vm47, %vm52
    %v55 = vsel %vm53, 1, 0
    %v56 = vsel %vm54, 1, 0
    %v57 = vcvt.s32.f32 %v55
    %v58 = vcvt.s32.f32 %v56
    %v59 = vld [vmem:[#allocation2] sm:$0xff]
    %v60 = vld [vmem:[#allocation2 + $0x8] sm:$0xff]
    %v61 = vld [vmem:[#allocation2 + $0x10] sm:$0xff]
    %v62 = vld [vmem:[#allocation2 + $0x18] sm:$0xff]
    %v63 = vld [vmem:[#allocation2 + $0x20] sm:$0xff]
    %v64 = vld [vmem:[#allocation2 + $0x28] sm:$0xff]
    %v65 = vld [vmem:[#allocation2 + $0x30] sm:$0xff]
    %v66 = vld [vmem:[#allocation2 + $0x38] sm:$0xff]
    %v67 = vld [vmem:[#allocation2 + $0x40] sm:$0xff]
    %v68 = vld [vmem:[#allocation2 + $0x48] sm:$0xff]
    %v69 = vld [vmem:[#allocation2 + $0x50] sm:$0xff]
    %v70 = vld [vmem:[#allocation2 + $0x58] sm:$0xff]
    %v71 = vld [vmem:[#allocation2 + $0x60] sm:$0xff]
    %v72 = vld [vmem:[#allocation2 + $0x68] sm:$0xff]
    %v73 = vld [vmem:[#allocation2 + $0x70] sm:$0xff]
    %v74 = vld [vmem:[#allocation2 + $0x78] sm:$0xff]
    %v75 = vld [vmem:[#allocation2 + $0x80] sm:$0xff]
    %v76 = vld [vmem:[#allocation2 + $0x88] sm:$0xff]
    %v77 = vld [vmem:[#allocation2 + $0x90] sm:$0xff]
    %v78 = vld [vmem:[#allocation2 + $0x98] sm:$0xff]
    %v79 = vld [vmem:[#allocation2 + $0xa0] sm:$0xff]
    %v80 = vld [vmem:[#allocation2 + $0xa8] sm:$0xff]
    %v81 = vld [vmem:[#allocation2 + $0xb0] sm:$0xff]
    %v82 = vld [vmem:[#allocation2 + $0xb8] sm:$0xff]
    %v83 = vld [vmem:[#allocation2 + $0xc0] sm:$0xff]
    %v84 = vld [vmem:[#allocation2 + $0xc8] sm:$0xff]
    %v85 = vld [vmem:[#allocation2 + $0xd0] sm:$0xff]
    %v86 = vld [vmem:[#allocation2 + $0xd8] sm:$0xff]
    %v87 = vld [vmem:[#allocation2 + $0xe0] sm:$0xff]
    %v88 = vld [vmem:[#allocation2 + $0xe8] sm:$0xff]
    %v89 = vld [vmem:[#allocation2 + $0xf0] sm:$0xff]
    %v90 = vld [vmem:[#allocation2 + $0xf8] sm:$0xff]
    %91 = vmatprep.subr.mxu0 0.0
    %92 = vmatpush1.msra.mxu0 %v74
    %93 = vmatprep.subr.mxu0 0.0
    %94 = vmatpush1.msra.mxu0 %v73
    %95 = vmatprep.subr.mxu0 0.0
    %96 = vmatpush1.msra.mxu0 %v72
    %97 = vmatprep.subr.mxu0 0.0
    %98 = vmatpush1.msra.mxu0 %v71
    %99 = vmatprep.subr.mxu0 0.0
    %100 = vmatpush1.msra.mxu0 %v70
    %101 = vmatprep.subr.mxu0 0.0
    %102 = vmatpush1.msra.mxu0 %v69
    %103 = vmatprep.subr.mxu0 0.0
    %104 = vmatpush1.msra.mxu0 %v68
    %105 = vmatprep.subr.mxu0 0.0
    %106 = vmatpush1.msra.mxu0 %v67
    %107 = vmatprep.subr.mxu0 0.0
    %108 = vmatpush1.msra.mxu0 %v66
    %109 = vmatprep.subr.mxu0 0.0
    %110 = vmatpush1.msra.mxu0 %v65
    %111 = vmatprep.subr.mxu0 0.0
    %112 = vmatpush1.msra.mxu0 %v64
    %113 = vmatprep.subr.mxu0 0.0
    %114 = vmatpush1.msra.mxu0 %v63
    %115 = vmatprep.subr.mxu0 0.0
    %116 = vmatpush1.msra.mxu0 %v62
    %117 = vmatprep.subr.mxu0 0.0
    %118 = vmatpush1.msra.mxu0 %v61
    %119 = vmatprep.subr.mxu0 0.0
    %120 = vmatpush1.msra.mxu0 %v60
    %121 = vmatprep.subr.mxu0 0.0
    %122 = vmatpush1.msra.mxu0 %v59
    %123 = vmatprep.subr.mxu0 0.0
    %124 = vmatpush2.msra.mxu0 %v90
    %125 = vmatprep.subr.mxu0 0.0
    %126 = vmatpush2.msra.mxu0 %v89
    %127 = vmatprep.subr.mxu0 0.0
    %128 = vmatpush2.msra.mxu0 %v88
    %129 = vmatprep.subr.mxu0 0.0
    %130 = vmatpush2.msra.mxu0 %v87
    %131 = vmatprep.subr.mxu0 0.0
    %132 = vmatpush2.msra.mxu0 %v86
    %133 = vmatprep.subr.mxu0 0.0
    %134 = vmatpush2.msra.mxu0 %v85
    %135 = vmatprep.subr.mxu0 0.0
    %136 = vmatpush2.msra.mxu0 %v84
    %137 = vmatprep.subr.mxu0 0.0
    %138 = vmatpush2.msra.mxu0 %v83
    %139 = vmatprep.subr.mxu0 0.0
    %140 = vmatpush2.msra.mxu0 %v82
    %141 = vmatprep.subr.mxu0 0.0
    %142 = vmatpush2.msra.mxu0 %v81
    %143 = vmatprep.subr.mxu0 0.0
    %144 = vmatpush2.msra.mxu0 %v80
    %145 = vmatprep.subr.mxu0 0.0
    %146 = vmatpush2.msra.mxu0 %v79
    %147 = vmatprep.subr.mxu0 0.0
    %148 = vmatpush2.msra.mxu0 %v78
    %149 = vmatprep.subr.mxu0 0.0
    %150 = vmatpush2.msra.mxu0 %v77
    %151 = vmatprep.subr.mxu0 0.0
    %152 = vmatpush2.msra.mxu0 %v76
    %153 = vmatprep.subr.mxu0 0.0
    %154 = vmatpush2.msra.mxu0 %v75
    %155 = vmatprep.mubr.f32.mxu0 %v58
    %156 = vmatmul.mubr.f32.gmra.mxu0 %v57
    %v157 = vpop.f32.mrf.mxu0
    %v158 = vadd.f32 0.0, %v157
    %v159 = vpop.f32.mrf.mxu0
    %160 = vdwg.mxu0
    %161 = vst [vmem:[%s2] sm:$0xff] %v158
    // Predicated region
    $region14: #{_bond_encoder_apply.1} parent=1 // pred_check
      _
    $region15: #{_bond_encoder_apply.1} parent=1 // pred_check_branch
      %163 = sbr.rel (0) target = $region17
    $region16: #{_bond_encoder_apply.1} parent=1 // pred_region
      _
    $region17: #{_bond_encoder_apply.1} parent=1 // pred_fallthru
      _
    // Predicated region
    $region18: #{_bond_encoder_apply.1} parent=1 // pred_check
      _
    $region19: #{_bond_encoder_apply.1} parent=1 // pred_check_branch
      %165 = sbr.rel (0) target = $region21
    $region20: #{_bond_encoder_apply.1} parent=1 // pred_region
      _
    $region21: #{_bond_encoder_apply.1} parent=1 // pred_fallthru
      _
    %166 = vsyncpa [#allocation3], 1

</llo_original>
